<compile_context>
chip_gen: v7x
topology: tpu7x:2x2x1
jax: 0.10.0
libtpu: 0.0.40
codegen_flags: <defaults>
</compile_context>

<pallas_src>
import jax
import jax.numpy as jnp
import numpy as np
from jax.experimental import pallas as pl
from jax.experimental.pallas import tpu as pltpu

_TILE_BYTES = 2 * 1024 * 1024        # per-operand VMEM tile target (v7x-safe)
_VMEM_LIMIT = 32 * 1024 * 1024       # explicit scoped-VMEM limit (ok on all gens)


def _shift_left(v):
    """out[:, j] = v[:, j + 1]; last column is a don't-care filler."""
    return jnp.concatenate([v[:, 1:], v[:, -1:]], axis=1)


def _shift_right(v):
    """out[:, j] = v[:, j - 1]; first column is a don't-care filler."""
    return jnp.concatenate([v[:, :1], v[:, :-1]], axis=1)


def _wavelet_filter_kernel(fe_ref, x_ref, o_ref):
    """Fused Haar analysis -> per-pixel filter -> Haar synthesis.

    x_ref / o_ref: (Rt, 2*w)  -- lanes [0,w) = even image rows, [w,2w) = odd rows
    fe_ref:        (3, Rt, w) -- filter, pre-expanded so value at lane 2j (and
                                 2j+1) equals filt[:, i, j] for that row-pair.
    """
    xb = x_ref[...]
    w = xb.shape[1] // 2

    r0 = xb[:, :w]                    # image row 2i,   all columns
    r1 = xb[:, w:]                    # image row 2i+1, all columns

    a = r0 + r1                       # row-pair sum per column
    d = r0 - r1                       # row-pair diff per column
    a_n = _shift_left(a)              # neighbouring column (2j+1) value at lane 2j
    d_n = _shift_left(d)

    # Haar analysis sums, valid at even lanes 2j (conv outputs are 0.5 * these).
    s_ll = a + a_n
    s_lh = a - a_n
    s_hl = d + d_n
    s_hh = d - d_n

    # Learnable per-pixel filter; forward()'s name swap means:
    #   ch0 -> conv-HH band, ch1 -> conv-HL band, ch2 -> conv-LH band.
    qh = fe_ref[0] * s_hh
    qv = fe_ref[1] * s_hl
    qd = fe_ref[2] * s_lh

    u0 = s_ll + qv                    # even output rows
    u1 = s_ll - qv                    # odd output rows
    v0 = qh + qd
    v1 = qh - qd

    lane = jax.lax.broadcasted_iota(jnp.int32, a.shape, 1)
    even = (lane % 2) == 0
    # recon[2i,   2j] = .25*(u0+v0);  recon[2i,   2j+1] = .25*(u0-v0)
    # recon[2i+1, 2j] = .25*(u1+v1);  recon[2i+1, 2j+1] = .25*(u1-v1)
    out_r0 = 0.25 * jnp.where(even, u0 + v0, _shift_right(u0 - v0))
    out_r1 = 0.25 * jnp.where(even, u1 + v1, _shift_right(u1 - v1))

    # single lane-dense store of the whole (Rt, 2w) block
    o_ref[...] = jnp.concatenate([out_r0, out_r1], axis=1)


def _largest_divisor_leq(n, cap):
    cap = max(1, min(n, int(cap)))
    for d in range(cap, 0, -1):
        if n % d == 0:
            return d
    return 1


def wavelet_filter_net(x, filt):
    """x: (b, 1, h, w) float32, filt: (3, h//2, w//2) float32 -> (b, 1, h, w)."""
    b, c, h, w = x.shape
    if c != 1:
        raise ValueError("WaveletFilterNet broadcasting requires a single input channel")
    if h % 2 or w % 2:
        raise ValueError("spatial dims must be even")
    h2, w2 = h // 2, w // 2
    assert filt.shape == (3, h2, w2)

    # Lane-expand the filter once: fe[:, i, 2j] == fe[:, i, 2j+1] == filt[:, i, j].
    fe = jnp.repeat(filt.astype(jnp.float32), 2, axis=2)            # (3, h2, w)

    row_bytes = 2 * w * 4                                           # one row-pair

    if h2 % 8 == 0:
        # --- main path: 2-D lane-dense layout (b*h2, 2w), row/batch tiling ---
        x2 = x.reshape(b * h2, 2 * w)                               # free reshape
        cap8 = max(1, _TILE_BYTES // (row_bytes * 8))
        ht = 8 * _largest_divisor_leq(h2 // 8, cap8)                # rows per tile
        bt = 1
        if ht == h2 and b > 1:
            # small images: fold several batch elements per tile, but keep >= 2
            # grid steps so both v7x TensorCores get work.
            cap_b = max(1, _TILE_BYTES // (h2 * row_bytes))
            bt = _largest_divisor_leq(b, max(1, min(cap_b, b // 2)))
        rt = bt * ht
        n_h, n_b = h2 // ht, b // bt
        fe_full = fe if bt == 1 else jnp.tile(fe, (1, bt, 1))       # (3, rt|h2, w)

        grid = (n_h, n_b)                                           # batch innermost
        x_spec = pl.BlockSpec((rt, 2 * w), lambda ih, ib: (ib * n_h + ih, 0))
        f_spec = pl.BlockSpec((3, rt, w), lambda ih, ib: (0, ih, 0))  # reused over ib
        out_shape = jax.ShapeDtypeStruct((b * h2, 2 * w), jnp.float32)
        out_spec = x_spec
        args = (fe_full, x2)
    else:
        # --- fallback (h2 not a multiple of 8): one image per step, squeezed
        # leading batch dim so the kernel still sees a 2-D (h2, 2w) block. ----
        x3 = x.reshape(b, h2, 2 * w)                                # free reshape
        grid = (1, b)
        x_spec = pl.BlockSpec((None, h2, 2 * w), lambda ih, ib: (ib, 0, 0))
        f_spec = pl.BlockSpec((3, h2, w), lambda ih, ib: (0, 0, 0))
        out_shape = jax.ShapeDtypeStruct((b, h2, 2 * w), jnp.float32)
        out_spec = x_spec
        args = (fe, x3)

    out = pl.pallas_call(
        _wavelet_filter_kernel,
        out_shape=out_shape,
        grid=grid,
        in_specs=[f_spec, x_spec],
        out_specs=out_spec,
        compiler_params=pltpu.CompilerParams(
            dimension_semantics=("parallel", "parallel"),
            vmem_limit_bytes=_VMEM_LIMIT),
    )(*args)

    return out.reshape(b, 1, h, w)                                  # free reshape


def _reference(x, filt):
    """Pure-jnp reference matching the PyTorch forward (c == 1)."""
    xs = x[:, 0]
    x00 = xs[:, 0::2, 0::2]; x01 = xs[:, 0::2, 1::2]
    x10 = xs[:, 1::2, 0::2]; x11 = xs[:, 1::2, 1::2]
    ll = 0.5 * (x00 + x01 + x10 + x11)
    lh = 0.5 * (x00 - x01 + x10 - x11)
    hl = 0.5 * (x00 + x01 - x10 - x11)
    hh = 0.5 * (x00 - x01 - x10 + x11)
    flh = hh * filt[0]; fhl = hl * filt[1]; fhh = lh * filt[2]
    a = 0.5 * (ll + flh + fhl + fhh)
    bb = 0.5 * (ll - flh + fhl - fhh)
    cc = 0.5 * (ll + flh - fhl - fhh)
    dd = 0.5 * (ll - flh - fhl + fhh)
    b_, h2, w2 = ll.shape
    out = jnp.stack([jnp.stack([a, bb], axis=-1),
                     jnp.stack([cc, dd], axis=-1)], axis=2)
    return out.reshape(b_, 2 * h2, 2 * w2)[:, None, :, :]


if __name__ == "__main__":
    b, c, h, w = 2, 1, 16, 16
    alpha = 1.0

    key = jax.random.PRNGKey(0)
    x = jax.random.normal(key, (b, c, h, w), dtype=jnp.float32)

    # deterministic parameter init, exactly as in WaveletFilterNet.__init__
    t = jnp.ones((1, h // 2, w // 2), dtype=jnp.float32)
    filt = jnp.concatenate(
        [(alpha - 0.1) * t, alpha * t, (alpha + 0.1) * t], axis=0)  # (3, h/2, w/2)

    out = jax.block_until_ready(jax.jit(wavelet_filter_net)(x, filt))
    ref = jax.block_until_ready(_reference(x, filt))

    assert out.shape == (b, c, h, w) and out.dtype == jnp.float32
    np.testing.assert_allclose(np.asarray(out), np.asarray(ref),
                               rtol=1e-5, atol=1e-5)
    print("KERNEL_OK")
</pallas_src>

<mosaic_0001>
module attributes {stable_mosaic.version = 11 : i64} {
  func.func @_wavelet_filter_kernel(%arg0: i32, %arg1: i32, %arg2: memref<3x8x16xf32, #tpu.memory_space<vmem>>, %arg3: memref<8x32xf32, #tpu.memory_space<vmem>>, %arg4: memref<8x32xf32, #tpu.memory_space<vmem>>) attributes {dimension_semantics = [#tpu.dimension_semantics<parallel>, #tpu.dimension_semantics<parallel>], iteration_bounds = array<i64: 1, 2>, scalar_prefetch = 0 : i64, scratch_operands = 0 : i64, tpu.core_type = #tpu.core_type<tc>, window_params = [{transform_indices = @transform_0, window_bounds = array<i64: 3, 8, 16>}, {transform_indices = @transform_1, window_bounds = array<i64: 8, 32>}, {transform_indices = @transform_2, window_bounds = array<i64: 8, 32>}]} {
    %c0 = arith.constant 0 : index
    %c0_0 = arith.constant 0 : index
    %0 = vector.load %arg3[%c0, %c0_0] : memref<8x32xf32, #tpu.memory_space<vmem>>, vector<8x32xf32>
    %1 = vector.extract_strided_slice %0 {offsets = [0, 0], sizes = [8, 16], strides = [1, 1]} : vector<8x32xf32> to vector<8x16xf32>
    %2 = vector.extract_strided_slice %0 {offsets = [0, 16], sizes = [8, 16], strides = [1, 1]} : vector<8x32xf32> to vector<8x16xf32>
    %3 = arith.addf %1, %2 : vector<8x16xf32>
    %4 = arith.subf %1, %2 : vector<8x16xf32>
    %5 = vector.extract_strided_slice %3 {offsets = [0, 1], sizes = [8, 15], strides = [1, 1]} : vector<8x16xf32> to vector<8x15xf32>
    %6 = vector.extract_strided_slice %3 {offsets = [0, 15], sizes = [8, 1], strides = [1, 1]} : vector<8x16xf32> to vector<8x1xf32>
    %7 = tpu.concatenate %5, %6 in 1 : vector<8x15xf32>, vector<8x1xf32> -> vector<8x16xf32>
    %8 = vector.extract_strided_slice %4 {offsets = [0, 1], sizes = [8, 15], strides = [1, 1]} : vector<8x16xf32> to vector<8x15xf32>
    %9 = vector.extract_strided_slice %4 {offsets = [0, 15], sizes = [8, 1], strides = [1, 1]} : vector<8x16xf32> to vector<8x1xf32>
    %10 = tpu.concatenate %8, %9 in 1 : vector<8x15xf32>, vector<8x1xf32> -> vector<8x16xf32>
    %11 = arith.addf %3, %7 : vector<8x16xf32>
    %12 = arith.subf %3, %7 : vector<8x16xf32>
    %13 = arith.addf %4, %10 : vector<8x16xf32>
    %14 = arith.subf %4, %10 : vector<8x16xf32>
    %c0_1 = arith.constant 0 : index
    %c0_2 = arith.constant 0 : index
    %c0_3 = arith.constant 0 : index
    %15 = vector.load %arg2[%c0_1, %c0_2, %c0_3] : memref<3x8x16xf32, #tpu.memory_space<vmem>>, vector<1x8x16xf32>
    %16 = vector.shape_cast %15 : vector<1x8x16xf32> to vector<8x16xf32>
    %17 = arith.mulf %16, %14 : vector<8x16xf32>
    %c1 = arith.constant 1 : index
    %c0_4 = arith.constant 0 : index
    %c0_5 = arith.constant 0 : index
    %18 = vector.load %arg2[%c1, %c0_4, %c0_5] : memref<3x8x16xf32, #tpu.memory_space<vmem>>, vector<1x8x16xf32>
    %19 = vector.shape_cast %18 : vector<1x8x16xf32> to vector<8x16xf32>
    %20 = arith.mulf %19, %13 : vector<8x16xf32>
    %c2 = arith.constant 2 : index
    %c0_6 = arith.constant 0 : index
    %c0_7 = arith.constant 0 : index
    %21 = vector.load %arg2[%c2, %c0_6, %c0_7] : memref<3x8x16xf32, #tpu.memory_space<vmem>>, vector<1x8x16xf32>
    %22 = vector.shape_cast %21 : vector<1x8x16xf32> to vector<8x16xf32>
    %23 = arith.mulf %22, %12 : vector<8x16xf32>
    %24 = arith.addf %11, %20 : vector<8x16xf32>
    %25 = arith.subf %11, %20 : vector<8x16xf32>
    %26 = arith.addf %17, %23 : vector<8x16xf32>
    %27 = arith.subf %17, %23 : vector<8x16xf32>
    %28 = tpu.iota {dimensions = array<i32: 1>} : vector<8x16xi32>
    %c2_i32 = arith.constant 2 : i32
    %c0_i32 = arith.constant 0 : i32
    %29 = arith.cmpi eq, %c2_i32, %c0_i32 : i32
    %c1_i32 = arith.constant 1 : i32
    %30 = arith.select %29, %c1_i32, %c2_i32 : i32
    %31 = vector.broadcast %30 : i32 to vector<8x16xi32>
    %32 = arith.remsi %28, %31 : vector<8x16xi32>
    %c0_i32_8 = arith.constant 0 : i32
    %33 = vector.broadcast %c0_i32_8 : i32 to vector<8x16xi32>
    %34 = arith.cmpi ne, %32, %33 : vector<8x16xi32>
    %c0_i32_9 = arith.constant 0 : i32
    %35 = vector.broadcast %c0_i32_9 : i32 to vector<8x16xi32>
    %36 = arith.cmpi slt, %32, %35 : vector<8x16xi32>
    %c0_i32_10 = arith.constant 0 : i32
    %37 = arith.cmpi slt, %30, %c0_i32_10 : i32
    %38 = vector.broadcast %37 : i1 to vector<8x16xi1>
    %39 = vector.broadcast %38 : vector<8x16xi1> to vector<8x16xi1>
    %40 = arith.xori %36, %39 : vector<8x16xi1>
    %41 = arith.andi %40, %34 : vector<8x16xi1>
    %42 = vector.broadcast %30 : i32 to vector<8x16xi32>
    %43 = arith.addi %32, %42 : vector<8x16xi32>
    %44 = arith.select %41, %43, %32 : vector<8x16xi1>, vector<8x16xi32>
    %c0_i32_11 = arith.constant 0 : i32
    %45 = vector.broadcast %c0_i32_11 : i32 to vector<8x16xi32>
    %46 = arith.cmpi eq, %44, %45 : vector<8x16xi32>
    %47 = arith.addf %24, %26 : vector<8x16xf32>
    %48 = arith.subf %24, %26 : vector<8x16xf32>
    %49 = vector.extract_strided_slice %48 {offsets = [0, 0], sizes = [8, 1], strides = [1, 1]} : vector<8x16xf32> to vector<8x1xf32>
    %50 = vector.extract_strided_slice %48 {offsets = [0, 0], sizes = [8, 15], strides = [1, 1]} : vector<8x16xf32> to vector<8x15xf32>
    %51 = tpu.concatenate %49, %50 in 1 : vector<8x1xf32>, vector<8x15xf32> -> vector<8x16xf32>
    %52 = arith.select %46, %47, %51 : vector<8x16xi1>, vector<8x16xf32>
    %cst = arith.constant 2.500000e-01 : f32
    %53 = vector.broadcast %cst : f32 to vector<8x16xf32>
    %54 = arith.mulf %53, %52 : vector<8x16xf32>
    %55 = arith.addf %25, %27 : vector<8x16xf32>
    %56 = arith.subf %25, %27 : vector<8x16xf32>
    %57 = vector.extract_strided_slice %56 {offsets = [0, 0], sizes = [8, 1], strides = [1, 1]} : vector<8x16xf32> to vector<8x1xf32>
    %58 = vector.extract_strided_slice %56 {offsets = [0, 0], sizes = [8, 15], strides = [1, 1]} : vector<8x16xf32> to vector<8x15xf32>
    %59 = tpu.concatenate %57, %58 in 1 : vector<8x1xf32>, vector<8x15xf32> -> vector<8x16xf32>
    %60 = arith.select %46, %55, %59 : vector<8x16xi1>, vector<8x16xf32>
    %cst_12 = arith.constant 2.500000e-01 : f32
    %61 = vector.broadcast %cst_12 : f32 to vector<8x16xf32>
    %62 = arith.mulf %61, %60 : vector<8x16xf32>
    %63 = tpu.concatenate %54, %62 in 1 : vector<8x16xf32>, vector<8x16xf32> -> vector<8x32xf32>
    %c0_13 = arith.constant 0 : index
    %c0_14 = arith.constant 0 : index
    %64 = vector.load %arg4[%c0_13, %c0_14] : memref<8x32xf32, #tpu.memory_space<vmem>>, vector<8x32xf32>
    tpu.vector_store %arg4[%c0_13, %c0_14], %63 {strides = array<i32>} : memref<8x32xf32, #tpu.memory_space<vmem>>, vector<8x32xf32>,
    return
  }
  func.func @transform_0(%arg0: i32, %arg1: i32) -> (i32, i32, i32) {
    %c0_i32 = arith.constant 0 : i32
    %c0_i32_0 = arith.constant 0 : i32
    %c0_i32_1 = arith.constant 0 : i32
    return %c0_i32, %arg0, %c0_i32_0 : i32, i32, i32
  }
  func.func @transform_1(%arg0: i32, %arg1: i32) -> (i32, i32) {
    %c1_i32 = arith.constant 1 : i32
    %0 = arith.muli %arg1, %c1_i32 : i32
    %1 = arith.addi %0, %arg0 : i32
    %c0_i32 = arith.constant 0 : i32
    %c0_i32_0 = arith.constant 0 : i32
    return %1, %c0_i32 : i32, i32
  }
  func.func @transform_2(%arg0: i32, %arg1: i32) -> (i32, i32) {
    %c1_i32 = arith.constant 1 : i32
    %0 = arith.muli %arg1, %c1_i32 : i32
    %1 = arith.addi %0, %arg0 : i32
    %c0_i32 = arith.constant 0 : i32
    %c0_i32_0 = arith.constant 0 : i32
    return %1, %c0_i32 : i32, i32
  }
}

</mosaic_0001>

<llo_original>
// kernel: wavelet_filter_net.1
$region0: #{wavelet_filter_net.1}
  #allocation0 [shape = 'u32[]', space=smem, size = 0x4, offset = 0x4, fixed_abs, tag = 'smem constant byte address 0x4 - core index']
  #allocation1 [shape = 'u32[144,128]{1,0:T(1,128)}', space=vmem, size = 0x12000, scoped, tag = 'internal scratch']
  %s0 = inlined_call_operand.vmem [shape: f32[3,8,16], index: 0, kind: input, shape index: {}]
  %s1 = inlined_call_operand.vmem [shape: f32[16,32], index: 1, kind: input, shape index: {}]
  %s2 = inlined_call_operand.vmem [shape: f32[16,32], index: 2, kind: output, shape index: {}]
  %s3 = sld [smem:[#allocation0]]
  $region41: #{wavelet_filter_net.1} parent=0
    _
  %s5 = ssub.s32 1, %s3
  %s6 = scalar_select 0, %s5, %s3
  loop: start=0, step=1, limit=4
  $region2: #{wavelet_filter_net.1} parent=0 // loop_pre_header
    _
  $region3: #{wavelet_filter_net.1} parent=0 // loop_header
    %s8 = sphi 0, %s12
    %p9 = scmp.ge.s32.totalorder %s8, 4
    %s15 = sphi 0, %s27
    %s16 = sphi 0, %s23
    %s17 = sphi 0, %s15
    %s18 = sphi 0, %s16
    %s19 = sphi 0, %s17
    %s20 = sphi 0, %s18
    %s30 = sphi 0, %s32
    %s33 = sphi 0, %s30
    %s34 = sphi 0, %s33
    %s50 = sphi 0, %s34
    %s58 = sphi 0, %s60
    %s61 = sphi 0, %s58
    %s62 = sphi 0, %s61
    %s78 = sphi 0, %s62
    %s86 = sphi 0, %s88
    %s89 = sphi 0, %s86
    %s90 = sphi 0, %s89
    %s106 = sphi 0, %s90
  $region4: #{wavelet_filter_net.1} parent=0 // loop_header_branch
    %11 = sbr.rel (%p9) target = $region8
  $region5: #{wavelet_filter_net.1} parent=0 // loop_body
    %s13 = ssub.s32 %s8, 1
    %s14 = ssub.s32 %s8, 2
    %s21 = sadd.s32 1, %s16
    %p22 = scmp.ge.s32.totalorder %s21, 2
    %s23 = scalar_select %p22, 0, %s21
    %s24 = sadd.s32 1, %s15
    %s25 = scalar_select %p22, %s24, %s15
    %p26 = scmp.ge.s32.totalorder %s25, 1
    %s27 = scalar_select %p26, 0, %s25
    %s28 = ssub.s32 %s15, %s27
    %p29 = scmp.eq.s32.totalorder %s28, 0
    %s31 = sadd.s32 %s30, 1
    %s32 = scalar_select %p29, %s30, %s31
    %p35 = pneg %p29
    %p36 = scmp.eq.s32.totalorder %s8, 1
    %p37 = por %p35, %p36
    %p38 = scmp.ne.s32.totalorder %s30, %s33
    %p39 = scmp.eq.s32.totalorder %s8, 0
    %p40 = por %p38, %p39
    %p41 = scmp.ne.s32.totalorder %s30, %s33
    %p42 = scmp.eq.s32.totalorder %s13, 1
    %p43 = por %p41, %p42
    %p44 = scmp.ne.s32.totalorder %s33, %s34
    %p45 = scmp.eq.s32.totalorder %s13, 0
    %p46 = por %p44, %p45
    %p47 = scmp.ne.s32.totalorder %s33, %s34
    %p48 = scmp.eq.s32.totalorder %s14, 1
    %p49 = por %p47, %p48
    %p51 = scmp.ne.s32.totalorder %s34, %s50
    %p52 = scmp.eq.s32.totalorder %s14, 0
    %p53 = por %p51, %p52
    %s54 = sadd.s32 %s16, %s15
    %s55 = sadd.s32 %s23, %s27
    %s56 = ssub.s32 %s54, %s55
    %p57 = scmp.eq.s32.totalorder %s56, 0
    %s59 = sadd.s32 %s58, 1
    %s60 = scalar_select %p57, %s58, %s59
    %p63 = pneg %p57
    %p64 = scmp.eq.s32.totalorder %s8, 1
    %p65 = por %p63, %p64
    %p66 = scmp.ne.s32.totalorder %s58, %s61
    %p67 = scmp.eq.s32.totalorder %s8, 0
    %p68 = por %p66, %p67
    %p69 = scmp.ne.s32.totalorder %s58, %s61
    %p70 = scmp.eq.s32.totalorder %s13, 1
    %p71 = por %p69, %p70
    %p72 = scmp.ne.s32.totalorder %s61, %s62
    %p73 = scmp.eq.s32.totalorder %s13, 0
    %p74 = por %p72, %p73
    %p75 = scmp.ne.s32.totalorder %s61, %s62
    %p76 = scmp.eq.s32.totalorder %s14, 1
    %p77 = por %p75, %p76
    %p79 = scmp.ne.s32.totalorder %s62, %s78
    %p80 = scmp.eq.s32.totalorder %s14, 0
    %p81 = por %p79, %p80
    %s82 = sadd.s32 %s16, %s15
    %s83 = sadd.s32 %s23, %s27
    %s84 = ssub.s32 %s82, %s83
    %p85 = scmp.eq.s32.totalorder %s84, 0
    %s87 = sadd.s32 %s86, 1
    %s88 = scalar_select %p85, %s86, %s87
    %p91 = pneg %p85
    %p92 = scmp.eq.s32.totalorder %s8, 1
    %p93 = por %p91, %p92
    %p94 = scmp.ne.s32.totalorder %s86, %s89
    %p95 = scmp.eq.s32.totalorder %s8, 0
    %p96 = por %p94, %p95
    %p97 = scmp.ne.s32.totalorder %s86, %s89
    %p98 = scmp.eq.s32.totalorder %s13, 1
    %p99 = por %p97, %p98
    %p100 = scmp.ne.s32.totalorder %s89, %s90
    %p101 = scmp.eq.s32.totalorder %s13, 0
    %p102 = por %p100, %p101
    %p103 = scmp.ne.s32.totalorder %s89, %s90
    %p104 = scmp.eq.s32.totalorder %s14, 1
    %p105 = por %p103, %p104
    %p107 = scmp.ne.s32.totalorder %s90, %s106
    %p108 = scmp.eq.s32.totalorder %s14, 0
    %p109 = por %p107, %p108
    %p110 = scmp.le.s32.totalorder 1, %s8
    %p111 = scmp.lt.s32.totalorder %s8, 3
    %p112 = pnand %p110, %p111
    %p113 = pneg %p112
    // Predicated region
    $region9: #{wavelet_filter_net.1} parent=5 // pred_check
      _
    $region10: #{wavelet_filter_net.1} parent=5 // pred_check_branch
      %115 = sbr.rel (%p112) target = $region12
    $region11: #{wavelet_filter_net.1} parent=5 // pred_region
      %s116 = ssub.s32 %s8, 1
      // Predicated region
      $region13: #{wavelet_filter_net.1} parent=11 // pred_check
        %p117 = pneg %p46
      $region14: #{wavelet_filter_net.1} parent=11 // pred_check_branch
        %119 = sbr.rel (%p117) target = $region16
      $region15: #{wavelet_filter_net.1} parent=11 // pred_region
        %p120 = scmp.lt.s32.totalorder %s17, 0
        %s121 = scalar_select %p120, %s17, 0
        %s122 = smul.addr %s121, 8
        %s123 = scalar_lea.vmem %s0, %s122
      $region16: #{wavelet_filter_net.1} parent=11 // pred_fallthru
        _
    $region12: #{wavelet_filter_net.1} parent=5 // pred_fallthru
      _
    %p124 = scmp.lt.s32.totalorder %s8, 2
    // Predicated region
    $region17: #{wavelet_filter_net.1} parent=5 // pred_check
      %p125 = pneg %p124
    $region18: #{wavelet_filter_net.1} parent=5 // pred_check_branch
      %127 = sbr.rel (%p125) target = $region20
    $region19: #{wavelet_filter_net.1} parent=5 // pred_region
      // Predicated region
      $region21: #{wavelet_filter_net.1} parent=19 // pred_check
        %p128 = pneg %p68
      $region22: #{wavelet_filter_net.1} parent=19 // pred_check_branch
        %130 = sbr.rel (%p128) target = $region24
      $region23: #{wavelet_filter_net.1} parent=19 // pred_region
        %s131 = sadd.s32 %s16, %s15
        %p132 = scmp.lt.s32.totalorder %s131, 1
        %s133 = scalar_select %p132, %s131, 1
        %s134 = smul.addr %s133, 8
        %s135 = scalar_lea.vmem %s1, %s134
        %s136 = sadd.s32 %s16, %s15
      $region24: #{wavelet_filter_net.1} parent=19 // pred_fallthru
        _
    $region20: #{wavelet_filter_net.1} parent=5 // pred_fallthru
      _
    %p137 = scmp.le.s32.totalorder 1, %s8
    %p138 = scmp.lt.s32.totalorder %s8, 3
    %p139 = pnand %p137, %p138
    %p140 = pneg %p139
    // Predicated region
    $region25: #{wavelet_filter_net.1} parent=5 // pred_check
      _
    $region26: #{wavelet_filter_net.1} parent=5 // pred_check_branch
      %142 = sbr.rel (%p139) target = $region28
    $region27: #{wavelet_filter_net.1} parent=5 // pred_region
      %s143 = ssub.s32 %s8, 1
      %p144 = scmp.lt.s32.totalorder %s17, 0
      %s145 = scalar_select %p144, %s17, 0
      %s146 = smul.addr %s145, 8
      %s147 = scalar_lea.vmem %s0, %s146
      %p148 = pneg %p46
      %p149 = pneg %p43
      %s150 = sadd.s32 %s18, %s17
      %p151 = scmp.lt.s32.totalorder %s150, 1
      %s152 = scalar_select %p151, %s150, 1
      %s153 = smul.addr %s152, 8
      %s154 = scalar_lea.vmem %s1, %s153
      %p155 = pneg %p74
      %p156 = pneg %p71
      %p157 = pneg %p102
      %p158 = pneg %p99
      %s159 = sadd.s32 %s18, %s17
      %p160 = scmp.lt.s32.totalorder %s159, 1
      %s161 = scalar_select %p160, %s159, 1
      %s162 = smul.addr %s161, 8
      %s163 = scalar_lea.vmem %s2, %s162
      %p164 = scmp.lt.s32.totalorder %s17, 0
      %s165 = scalar_select %p164, %s17, 0
      %s166 = smul.addr %s165, 8
      %s167 = scalar_lea.vmem %s0, %s166
      %s168 = sadd.s32 %s18, %s17
      %p169 = scmp.lt.s32.totalorder %s168, 1
      %s170 = scalar_select %p169, %s168, 1
      %s171 = smul.addr %s170, 8
      %s172 = scalar_lea.vmem %s1, %s171
      %s173 = sadd.s32 %s18, %s17
      %s174 = sadd.s32 %s18, %s17
      %p175 = scmp.lt.s32.totalorder %s174, 1
      %s176 = scalar_select %p175, %s174, 1
      %s177 = smul.addr %s176, 8
      %s178 = scalar_lea.vmem %s2, %s177
      %s179 = sadd.s32 %s18, %s17
      %v180 = vld [vmem:[%s172] sm:$0xff]
      %182 = vrot.lane.b32.xlu0 %v180, 112
      %v183 = vpop.permute.xlu0 %182
      %v185 = vadd.f32 %v180, %v183
      %v186 = vsub.f32 %v180, %v183
      %188 = vrot.lane.b32.xlu0 %v185, 127
      %v189 = vpop.permute.xlu0 %188
      %vm191 = vcmask 121856
      %v192 = vsel %vm191, %v189, %v185
      %194 = vrot.lane.b32.xlu0 %v186, 127
      %v195 = vpop.permute.xlu0 %194
      %v197 = vsel %vm191, %v195, %v186
      %v198 = vadd.f32 %v185, %v192
      %v199 = vsub.f32 %v185, %v192
      %v200 = vadd.f32 %v186, %v197
      %v201 = vsub.f32 %v186, %v197
      %v202 = vld [vmem:[%s167] sm:$0xff]
      %v203 = vmul.f32 %v202, %v201
      %s204 = scalar_lea.vmem %s167, 8
      %v205 = vld [vmem:[%s204] sm:$0xff]
      %v206 = vmul.f32 %v205, %v200
      %s207 = scalar_lea.vmem %s167, 16
      %v208 = vld [vmem:[%s207] sm:$0xff]
      %v209 = vmul.f32 %v208, %v199
      %v210 = vadd.f32 %v198, %v206
      %v211 = vsub.f32 %v198, %v206
      %v212 = vadd.f32 %v203, %v209
      %v213 = vsub.f32 %v203, %v209
      %v214 = vlaneseq
      %v215 = vand.u32 %v214, 127
      %vm216 = vcmp.lt.s32.totalorder %v215, 0
      %v217 = vsub.s32 0, %v215
      %v218 = vsel %vm216, %v217, %v215
      %v219 = vshrl.u32 %v218, 1
      %v220 = vand.u32 %v218, 1
      %v221 = vsub.s32 0, %v220
      %v222 = vsel %vm216, %v221, %v220
      %vm223 = vcmp.ne.s32.totalorder %v222, 0
      %vm224 = vcmp.lt.s32.totalorder %v222, 0
      %vm225 = vmand %vm224, %vm223
      %v226 = vadd.s32 %v222, 2
      %v227 = vsel %vm225, %v226, %v222
      %vm228 = vcmp.eq.s32.totalorder %v227, 0
      %v229 = vadd.f32 %v210, %v212
      %v230 = vsub.f32 %v210, %v212
      %232 = vrot.lane.b32.xlu0 %v230, 1
      %v233 = vpop.permute.xlu0 %232
      %vm235 = vcmask 7168
      %v236 = vsel %vm235, %v230, %v233
      %v237 = vsel %vm228, %v229, %v236
      %v238 = vmul.f32 %v237, 0.25
      %v239 = vadd.f32 %v211, %v213
      %v240 = vsub.f32 %v211, %v213
      %242 = vrot.lane.b32.xlu0 %v240, 1
      %v243 = vpop.permute.xlu0 %242
      %v245 = vsel %vm235, %v240, %v243
      %v246 = vsel %vm228, %v239, %v245
      %v247 = vmul.f32 %v246, 0.25
      %249 = vrot.lane.b32.xlu0 %v247, 16
      %v250 = vpop.permute.xlu0 %249
      %vm252 = vcmask 130048
      %v253 = vsel %vm252, %v238, %v250
      %vm254 = vcmask 261120
      %255 = vst.msk [vmem:[%s178] sm:$0xff] %vm254, %v253
      %s256 = sadd.s32 %s18, %s17
      %p257 = scmp.lt.s32.totalorder %s256, 1
      %s258 = scalar_select %p257, %s256, 1
      %s259 = smul.addr %s258, 8
      %s260 = scalar_lea.vmem %s2, %s259
      // Predicated region
      $region29: #{wavelet_filter_net.1} parent=27 // pred_check
        %p261 = pneg %p99
      $region30: #{wavelet_filter_net.1} parent=27 // pred_check_branch
        %263 = sbr.rel (%p261) target = $region32
      $region31: #{wavelet_filter_net.1} parent=27 // pred_region
        %s264 = sadd.s32 %s18, %s17
      $region32: #{wavelet_filter_net.1} parent=27 // pred_fallthru
        _
    $region28: #{wavelet_filter_net.1} parent=5 // pred_fallthru
      _
    %p265 = scmp.le.s32.totalorder 2, %s8
    // Predicated region
    $region33: #{wavelet_filter_net.1} parent=5 // pred_check
      %p266 = pneg %p265
    $region34: #{wavelet_filter_net.1} parent=5 // pred_check_branch
      %268 = sbr.rel (%p266) target = $region36
    $region35: #{wavelet_filter_net.1} parent=5 // pred_region
      %s269 = ssub.s32 %s8, 2
      // Predicated region
      $region37: #{wavelet_filter_net.1} parent=35 // pred_check
        %p270 = pneg %p105
      $region38: #{wavelet_filter_net.1} parent=35 // pred_check_branch
        %272 = sbr.rel (%p270) target = $region40
      $region39: #{wavelet_filter_net.1} parent=35 // pred_region
        %s273 = sadd.s32 %s20, %s19
        %p274 = scmp.lt.s32.totalorder %s273, 1
        %s275 = scalar_select %p274, %s273, 1
        %s276 = smul.addr %s275, 8
        %s277 = scalar_lea.vmem %s2, %s276
      $region40: #{wavelet_filter_net.1} parent=35 // pred_fallthru
        _
    $region36: #{wavelet_filter_net.1} parent=5 // pred_fallthru
      _
  $region6: #{wavelet_filter_net.1} parent=0 // loop_footer
    %s12 = sadd.s32 1, %s8
  $region7: #{wavelet_filter_net.1} parent=0 // loop_footer_branch
    %7 = sbr.rel target = $region3
  $region8: #{wavelet_filter_net.1} parent=0 // loop_exit
    _

</llo_original>
